<compile_context>
chip_gen: v7x
topology: tpu7x:2x2x1
jax: 0.10.0
libtpu: 0.0.40
codegen_flags: <defaults>
</compile_context>

<pallas_src>
import numpy as np
import jax
import jax.numpy as jnp
from jax.experimental import pallas as pl
from jax.experimental.pallas import tpu as pltpu


def _round_up(x, m):
    return (x + m - 1) // m * m


def make_odefunc_kernel(H, W, C, G, Bt, CP, SEC, eps=1e-5):
    HW = H * W
    L = Bt * HW          # lane extent of one grid step (Bt samples side by side)
    Cin = C + 1          # t channel + C activation channels
    KP = 9 * CP          # matmul K: 9 taps x CP (sublane-padded) input channels
    gs = C // G
    inv_n = 1.0 / float(HW * gs)
    taps = [(dy, dx) for dy in range(3) for dx in range(3)]

    def group_reduce(v):
        # v: (C, 1) per-channel sums -> per-channel totals over the channel group.
        if gs == 1:          # G == C: groups are single channels, nothing to do.
            return v
        vg = jnp.sum(v.reshape(G, gs), axis=1, keepdims=True)
        return jnp.broadcast_to(vg, (G, gs)).reshape(C, 1)

    def kernel(t_ref, x_ref, mask_ref, p_ref, o_ref, slab_ref):
        t = t_ref[0]

        # Slab rows that never change within this grid step: row 0 is the constant-t
        # channel, rows Cin..CP-1 are zero padding (written once, reused by both convs).
        slab_ref[0:1, :] = jnp.full((1, L), t, jnp.float32)
        if CP > Cin:
            slab_ref[Cin:CP, :] = jnp.zeros((CP - Cin, L), jnp.float32)

        # Packed parameters: rows [0, SEC) conv1 W, [SEC, 2*SEC) conv2 W,
        # [2*SEC, 3*SEC) the eight per-channel vectors in lanes 0..7.
        w1 = p_ref[0:C, 0:KP]                       # (C, KP)
        w2 = p_ref[SEC:SEC + C, 0:KP]               # (C, KP)
        vec = p_ref[2 * SEC:2 * SEC + C, 0:8]       # (C, 8)
        gn1_w, gn1_b, c1_b = vec[:, 0:1], vec[:, 1:2], vec[:, 2:3]
        gn2_w, gn2_b, c2_b = vec[:, 3:4], vec[:, 4:5], vec[:, 5:6]
        gn3_w, gn3_b = vec[:, 6:7], vec[:, 7:8]

        def group_norm(x, w, b):
            # x: (C, L); per-sample GroupNorm with per-channel affine.
            parts = []
            for s in range(Bt):                      # lane-aligned static slices
                xs = x[:, s * HW:(s + 1) * HW]
                mean = group_reduce(jnp.sum(xs, axis=1, keepdims=True)) * inv_n
                xc = xs - mean
                var = group_reduce(jnp.sum(xc * xc, axis=1, keepdims=True)) * inv_n
                parts.append(xc * jax.lax.rsqrt(var + eps))
            xn = parts[0] if Bt == 1 else jnp.concatenate(parts, axis=1)
            return xn * w + b

        def concat_conv(act, w, b):
            # act: (C, L), already ReLU'd.  3x3 "same" conv over concat([t, act]),
            # batched over all Bt samples in one MXU matmul.
            slab_ref[1:1 + C, :] = act
            slab = slab_ref[...]                                   # (CP, L)
            cols = []
            for k, (dy, dx) in enumerate(taps):
                off = (dy - 1) * W + (dx - 1)                      # flat input offset
                sh = (-off) % L
                shifted = slab if sh == 0 else pltpu.roll(slab, sh, axis=1)
                # mask_ref[k] is (CP, L): zero where the tap falls outside the image
                # of its sample (this also zeroes any cross-sample spill of the roll).
                cols.append(shifted * mask_ref[k])
            im = jnp.concatenate(cols, axis=0)                     # (KP, L), registers
            return jnp.dot(w, im, preferred_element_type=jnp.float32) + b

        out = group_norm(x_ref[...], gn1_w, gn1_b)
        out = jnp.maximum(out, 0.0)
        out = concat_conv(out, w1, c1_b)
        out = group_norm(out, gn2_w, gn2_b)
        out = jnp.maximum(out, 0.0)
        out = concat_conv(out, w2, c2_b)
        out = group_norm(out, gn3_w, gn3_b)
        o_ref[...] = out

    return kernel


def odefunc_forward(t, x_nchw, params):
    B, C, H, W = x_nchw.shape
    G = min(32, C)
    HW = H * W
    Cin = C + 1
    CP = _round_up(Cin, 8)      # per-tap input channels padded to a sublane multiple
    KP = 9 * CP
    KL = _round_up(KP, 128)     # lane width of the packed parameter slab
    SEC = _round_up(C, 8)       # sublane height of each parameter section

    # ---- VMEM budget / samples per grid step -------------------------------------
    try:
        vmem_cap = int(pltpu.get_tpu_info().vmem_capacity_bytes)
    except Exception:
        vmem_cap = 64 << 20     # conservative (v7x) fallback
    per_sample = 8 * 4 * C * HW                      # rough working-set bytes/sample
    Bt = max(1, min(B, 8, (vmem_cap // 8) // max(per_sample, 1)))
    if B >= 2:
        Bt = min(Bt, max(1, B // 2))                 # keep >= 2 parallel grid steps
    while B % Bt:
        Bt -= 1
    L = Bt * HW

    # ---- layout: (B, C, H, W) -> (C, B*HW), samples stacked on the lane axis ------
    x_cl = jnp.transpose(jnp.asarray(x_nchw, jnp.float32).reshape(B, C, HW),
                         (1, 0, 2)).reshape(C, B * HW)
    t_arr = jnp.asarray(t, jnp.float32).reshape((1,))

    # ---- per-tap validity masks, tiled per sample, pre-broadcast to CP sublanes ---
    yy = np.arange(H)[:, None]
    xx = np.arange(W)[None, :]
    m = np.zeros((9, HW), np.float32)
    for dy in range(3):
        for dx in range(3):
            valid = ((yy + dy - 1 >= 0) & (yy + dy - 1 < H) &
                     (xx + dx - 1 >= 0) & (xx + dx - 1 < W))
            m[dy * 3 + dx] = valid.reshape(-1).astype(np.float32)
    m = np.tile(m, (1, Bt))                                        # (9, L)
    masks = jnp.asarray(np.broadcast_to(m[:, None, :], (9, CP, L)).copy())

    # ---- pack all parameters into one (3*SEC, KL) slab -----------------------------
    def conv_w(w_oihw):
        # (Cout, Cin, 3, 3) -> (Cout, 9*CP), taps laid out [dy, dx, cin] with the
        # cin axis zero-padded from Cin=C+1 up to CP (sublane aligned).
        w = jnp.transpose(jnp.asarray(w_oihw, jnp.float32), (2, 3, 1, 0))  # (3,3,Cin,C)
        w = jnp.pad(w, ((0, 0), (0, 0), (0, CP - Cin), (0, 0)))            # (3,3,CP,C)
        return jnp.transpose(w.reshape(KP, C), (1, 0))                     # (C, KP)

    def sec_block(mat):
        r, c = mat.shape
        return jnp.pad(mat, ((0, SEC - r), (0, KL - c)))

    vec_cols = jnp.stack(
        [jnp.asarray(params[k], jnp.float32) for k in
         ("gn1_w", "gn1_b", "conv1_b", "gn2_w", "gn2_b", "conv2_b", "gn3_w", "gn3_b")],
        axis=1)                                                            # (C, 8)
    pslab = jnp.concatenate([sec_block(conv_w(params["conv1_w"])),
                             sec_block(conv_w(params["conv2_w"])),
                             sec_block(vec_cols)], axis=0)                 # (3*SEC, KL)

    kernel = make_odefunc_kernel(H, W, C, G, Bt, CP, SEC)

    act_spec = pl.BlockSpec((C, L), lambda i: (0, i))
    cost = pl.CostEstimate(
        flops=int(4 * C * KP * HW * B + 24 * C * HW * B),
        transcendentals=int(3 * B * C),
        bytes_accessed=int(8 * B * C * HW + 4 * (3 * SEC * KL + 9 * CP * L)))

    out = pl.pallas_call(
        kernel,
        out_shape=jax.ShapeDtypeStruct((C, B * HW), jnp.float32),
        grid_spec=pltpu.PrefetchScalarGridSpec(
            num_scalar_prefetch=0,
            grid=(B // Bt,),
            in_specs=[
                pl.BlockSpec(memory_space=pltpu.MemorySpace.SMEM),   # t scalar
                act_spec,                                            # x  (C, Bt*HW)
                pl.BlockSpec((9, CP, L), lambda i: (0, 0, 0)),       # tap masks
                pl.BlockSpec((3 * SEC, KL), lambda i: (0, 0)),       # packed params
            ],
            out_specs=act_spec,
            scratch_shapes=[
                pltpu.VMEM((CP, L), jnp.float32),                    # [t, act, 0-pad] slab
            ],
        ),
        compiler_params=pltpu.CompilerParams(
            dimension_semantics=("parallel",),
            vmem_limit_bytes=int(min(vmem_cap // 2, 64 << 20))),
        cost_estimate=cost,
    )(t_arr, x_cl, masks, pslab)

    return jnp.transpose(out.reshape(C, B, HW), (1, 0, 2)).reshape(B, C, H, W)


def ref_forward(t, x, params):
    """Plain-JAX reference matching the PyTorch module semantics."""
    C = x.shape[1]
    G = min(32, C)
    eps = 1e-5

    def gn(x, w, b):
        N, C_, H, W = x.shape
        xg = x.reshape(N, G, -1)
        mean = xg.mean(-1, keepdims=True)
        var = ((xg - mean) ** 2).mean(-1, keepdims=True)
        xn = ((xg - mean) / jnp.sqrt(var + eps)).reshape(N, C_, H, W)
        return xn * w[None, :, None, None] + b[None, :, None, None]

    def cconv(t, x, w, b):
        N, C_, H, W = x.shape
        tt = jnp.full((N, 1, H, W), t, x.dtype)
        ttx = jnp.concatenate([tt, x], axis=1)
        y = jax.lax.conv_general_dilated(
            ttx, w, window_strides=(1, 1), padding=((1, 1), (1, 1)),
            dimension_numbers=("NCHW", "OIHW", "NCHW"),
            precision=jax.lax.Precision.HIGHEST)
        return y + b[None, :, None, None]

    out = gn(x, params["gn1_w"], params["gn1_b"])
    out = jax.nn.relu(out)
    out = cconv(t, out, params["conv1_w"], params["conv1_b"])
    out = gn(out, params["gn2_w"], params["gn2_b"])
    out = jax.nn.relu(out)
    out = cconv(t, out, params["conv2_w"], params["conv2_b"])
    out = gn(out, params["gn3_w"], params["gn3_b"])
    return out


if __name__ == "__main__":
    B, C, H, W = 2, 4, 16, 16
    key = jax.random.PRNGKey(0)
    keys = jax.random.split(key, 12)
    params = {
        "gn1_w": 1.0 + 0.1 * jax.random.normal(keys[0], (C,), jnp.float32),
        "gn1_b": 0.1 * jax.random.normal(keys[1], (C,), jnp.float32),
        "conv1_w": 0.2 * jax.random.normal(keys[2], (C, C + 1, 3, 3), jnp.float32),
        "conv1_b": 0.1 * jax.random.normal(keys[3], (C,), jnp.float32),
        "gn2_w": 1.0 + 0.1 * jax.random.normal(keys[4], (C,), jnp.float32),
        "gn2_b": 0.1 * jax.random.normal(keys[5], (C,), jnp.float32),
        "conv2_w": 0.2 * jax.random.normal(keys[6], (C, C + 1, 3, 3), jnp.float32),
        "conv2_b": 0.1 * jax.random.normal(keys[7], (C,), jnp.float32),
        "gn3_w": 1.0 + 0.1 * jax.random.normal(keys[8], (C,), jnp.float32),
        "gn3_b": 0.1 * jax.random.normal(keys[9], (C,), jnp.float32),
    }
    x = jax.random.normal(keys[10], (B, C, H, W), jnp.float32)
    t = jnp.float32(0.5)

    y = jax.block_until_ready(odefunc_forward(t, x, params))
    y_ref = jax.block_until_ready(ref_forward(t, x, params))
    np.testing.assert_allclose(np.asarray(y), np.asarray(y_ref), rtol=1e-3, atol=1e-3)
    print("KERNEL_OK")
</pallas_src>

<mosaic_0001>
module attributes {stable_mosaic.version = 11 : i64} {
  func.func @kernel(%arg0: i32, %arg1: memref<1xf32, #tpu.memory_space<smem>>, %arg2: memref<4x256xf32, #tpu.memory_space<vmem>>, %arg3: memref<9x8x256xf32, #tpu.memory_space<vmem>>, %arg4: memref<24x128xf32, #tpu.memory_space<vmem>>, %arg5: memref<4x256xf32, #tpu.memory_space<vmem>>, %arg6: memref<8x256xf32, #tpu.memory_space<vmem>>) attributes {dimension_semantics = [#tpu.dimension_semantics<parallel>], iteration_bounds = array<i64: 2>, scalar_prefetch = 0 : i64, scratch_operands = 1 : i64, tpu.core_type = #tpu.core_type<tc>, window_params = [{transform_indices = @transform_0, window_bounds = array<i64: 1>}, {transform_indices = @transform_1, window_bounds = array<i64: 4, 256>}, {pipeline_mode = #tpu.pipeline_mode<synchronous>, transform_indices = @transform_2, window_bounds = array<i64: 9, 8, 256>}, {pipeline_mode = #tpu.pipeline_mode<synchronous>, transform_indices = @transform_3, window_bounds = array<i64: 24, 128>}, {transform_indices = @transform_4, window_bounds = array<i64: 4, 256>}]} {
    %c0 = arith.constant 0 : index
    %0 = memref.load %arg1[%c0] : memref<1xf32, #tpu.memory_space<smem>>
    %1 = vector.broadcast %0 : f32 to vector<1x256xf32>
    %c0_0 = arith.constant 0 : index
    %c0_1 = arith.constant 0 : index
    %2 = vector.load %arg6[%c0_0, %c0_1] : memref<8x256xf32, #tpu.memory_space<vmem>>, vector<1x256xf32>
    tpu.vector_store %arg6[%c0_0, %c0_1], %1 {strides = array<i32>} : memref<8x256xf32, #tpu.memory_space<vmem>>, vector<1x256xf32>,
    %cst = arith.constant 0.000000e+00 : f32
    %3 = vector.broadcast %cst : f32 to vector<3x256xf32>
    %c5 = arith.constant 5 : index
    %c0_2 = arith.constant 0 : index
    %4 = vector.load %arg6[%c5, %c0_2] : memref<8x256xf32, #tpu.memory_space<vmem>>, vector<3x256xf32>
    tpu.vector_store %arg6[%c5, %c0_2], %3 {strides = array<i32>} : memref<8x256xf32, #tpu.memory_space<vmem>>, vector<3x256xf32>,
    %c0_3 = arith.constant 0 : index
    %c0_4 = arith.constant 0 : index
    %5 = vector.load %arg4[%c0_3, %c0_4] : memref<24x128xf32, #tpu.memory_space<vmem>>, vector<4x72xf32>
    %c8 = arith.constant 8 : index
    %c0_5 = arith.constant 0 : index
    %6 = vector.load %arg4[%c8, %c0_5] : memref<24x128xf32, #tpu.memory_space<vmem>>, vector<4x72xf32>
    %c16 = arith.constant 16 : index
    %c0_6 = arith.constant 0 : index
    %7 = vector.load %arg4[%c16, %c0_6] : memref<24x128xf32, #tpu.memory_space<vmem>>, vector<4x8xf32>
    %8 = vector.extract_strided_slice %7 {offsets = [0, 0], sizes = [4, 1], strides = [1, 1]} : vector<4x8xf32> to vector<4x1xf32>
    %9 = vector.extract_strided_slice %7 {offsets = [0, 1], sizes = [4, 1], strides = [1, 1]} : vector<4x8xf32> to vector<4x1xf32>
    %10 = vector.extract_strided_slice %7 {offsets = [0, 2], sizes = [4, 1], strides = [1, 1]} : vector<4x8xf32> to vector<4x1xf32>
    %11 = vector.extract_strided_slice %7 {offsets = [0, 3], sizes = [4, 1], strides = [1, 1]} : vector<4x8xf32> to vector<4x1xf32>
    %12 = vector.extract_strided_slice %7 {offsets = [0, 4], sizes = [4, 1], strides = [1, 1]} : vector<4x8xf32> to vector<4x1xf32>
    %13 = vector.extract_strided_slice %7 {offsets = [0, 5], sizes = [4, 1], strides = [1, 1]} : vector<4x8xf32> to vector<4x1xf32>
    %14 = vector.extract_strided_slice %7 {offsets = [0, 6], sizes = [4, 1], strides = [1, 1]} : vector<4x8xf32> to vector<4x1xf32>
    %15 = vector.extract_strided_slice %7 {offsets = [0, 7], sizes = [4, 1], strides = [1, 1]} : vector<4x8xf32> to vector<4x1xf32>
    %c0_7 = arith.constant 0 : index
    %c0_8 = arith.constant 0 : index
    %16 = vector.load %arg2[%c0_7, %c0_8] : memref<4x256xf32, #tpu.memory_space<vmem>>, vector<4x256xf32>
    %cst_9 = arith.constant dense<0.000000e+00> : vector<4xf32>
    %17 = vector.multi_reduction <add>, %16, %cst_9 [1] : vector<4x256xf32> to vector<4xf32>
    %18 = vector.shape_cast %17 : vector<4xf32> to vector<4x1xf32>
    %cst_10 = arith.constant 3.906250e-03 : f32
    %19 = vector.broadcast %cst_10 : f32 to vector<4x1xf32>
    %20 = arith.mulf %18, %19 : vector<4x1xf32>
    %21 = vector.broadcast %20 : vector<4x1xf32> to vector<4x256xf32>
    %22 = arith.subf %16, %21 : vector<4x256xf32>
    %23 = arith.mulf %22, %22 : vector<4x256xf32>
    %cst_11 = arith.constant dense<0.000000e+00> : vector<4xf32>
    %24 = vector.multi_reduction <add>, %23, %cst_11 [1] : vector<4x256xf32> to vector<4xf32>
    %25 = vector.shape_cast %24 : vector<4xf32> to vector<4x1xf32>
    %cst_12 = arith.constant 3.906250e-03 : f32
    %26 = vector.broadcast %cst_12 : f32 to vector<4x1xf32>
    %27 = arith.mulf %25, %26 : vector<4x1xf32>
    %cst_13 = arith.constant 9.99999974E-6 : f32
    %28 = vector.broadcast %cst_13 : f32 to vector<4x1xf32>
    %29 = arith.addf %27, %28 : vector<4x1xf32>
    %30 = math.rsqrt %29 : vector<4x1xf32>
    %31 = vector.broadcast %30 : vector<4x1xf32> to vector<4x256xf32>
    %32 = arith.mulf %22, %31 : vector<4x256xf32>
    %33 = vector.broadcast %8 : vector<4x1xf32> to vector<4x256xf32>
    %34 = arith.mulf %32, %33 : vector<4x256xf32>
    %35 = vector.broadcast %9 : vector<4x1xf32> to vector<4x256xf32>
    %36 = arith.addf %34, %35 : vector<4x256xf32>
    %cst_14 = arith.constant 0.000000e+00 : f32
    %37 = vector.broadcast %cst_14 : f32 to vector<4x256xf32>
    %38 = arith.maximumf %36, %37 : vector<4x256xf32>
    %c1 = arith.constant 1 : index
    %c0_15 = arith.constant 0 : index
    %39 = vector.load %arg6[%c1, %c0_15] : memref<8x256xf32, #tpu.memory_space<vmem>>, vector<4x256xf32>
    tpu.vector_store %arg6[%c1, %c0_15], %38 {strides = array<i32>} : memref<8x256xf32, #tpu.memory_space<vmem>>, vector<4x256xf32>,
    %c0_16 = arith.constant 0 : index
    %c0_17 = arith.constant 0 : index
    %40 = vector.load %arg6[%c0_16, %c0_17] : memref<8x256xf32, #tpu.memory_space<vmem>>, vector<8x256xf32>
    %c17_i32 = arith.constant 17 : i32
    %41 = tpu.dynamic_rotate %40 by %c17_i32 dim 1 : vector<8x256xf32>, i32 -> vector<8x256xf32>
    %c0_18 = arith.constant 0 : index
    %c0_19 = arith.constant 0 : index
    %c0_20 = arith.constant 0 : index
    %42 = vector.load %arg3[%c0_18, %c0_19, %c0_20] : memref<9x8x256xf32, #tpu.memory_space<vmem>>, vector<1x8x256xf32>
    %43 = vector.shape_cast %42 : vector<1x8x256xf32> to vector<8x256xf32>
    %44 = arith.mulf %41, %43 : vector<8x256xf32>
    %c16_i32 = arith.constant 16 : i32
    %45 = tpu.dynamic_rotate %40 by %c16_i32 dim 1 : vector<8x256xf32>, i32 -> vector<8x256xf32>
    %c1_21 = arith.constant 1 : index
    %c0_22 = arith.constant 0 : index
    %c0_23 = arith.constant 0 : index
    %46 = vector.load %arg3[%c1_21, %c0_22, %c0_23] : memref<9x8x256xf32, #tpu.memory_space<vmem>>, vector<1x8x256xf32>
    %47 = vector.shape_cast %46 : vector<1x8x256xf32> to vector<8x256xf32>
    %48 = arith.mulf %45, %47 : vector<8x256xf32>
    %c15_i32 = arith.constant 15 : i32
    %49 = tpu.dynamic_rotate %40 by %c15_i32 dim 1 : vector<8x256xf32>, i32 -> vector<8x256xf32>
    %c2 = arith.constant 2 : index
    %c0_24 = arith.constant 0 : index
    %c0_25 = arith.constant 0 : index
    %50 = vector.load %arg3[%c2, %c0_24, %c0_25] : memref<9x8x256xf32, #tpu.memory_space<vmem>>, vector<1x8x256xf32>
    %51 = vector.shape_cast %50 : vector<1x8x256xf32> to vector<8x256xf32>
    %52 = arith.mulf %49, %51 : vector<8x256xf32>
    %c1_i32 = arith.constant 1 : i32
    %53 = tpu.dynamic_rotate %40 by %c1_i32 dim 1 : vector<8x256xf32>, i32 -> vector<8x256xf32>
    %c3 = arith.constant 3 : index
    %c0_26 = arith.constant 0 : index
    %c0_27 = arith.constant 0 : index
    %54 = vector.load %arg3[%c3, %c0_26, %c0_27] : memref<9x8x256xf32, #tpu.memory_space<vmem>>, vector<1x8x256xf32>
    %55 = vector.shape_cast %54 : vector<1x8x256xf32> to vector<8x256xf32>
    %56 = arith.mulf %53, %55 : vector<8x256xf32>
    %c4 = arith.constant 4 : index
    %c0_28 = arith.constant 0 : index
    %c0_29 = arith.constant 0 : index
    %57 = vector.load %arg3[%c4, %c0_28, %c0_29] : memref<9x8x256xf32, #tpu.memory_space<vmem>>, vector<1x8x256xf32>
    %58 = vector.shape_cast %57 : vector<1x8x256xf32> to vector<8x256xf32>
    %59 = arith.mulf %40, %58 : vector<8x256xf32>
    %c255_i32 = arith.constant 255 : i32
    %60 = tpu.dynamic_rotate %40 by %c255_i32 dim 1 : vector<8x256xf32>, i32 -> vector<8x256xf32>
    %c5_30 = arith.constant 5 : index
    %c0_31 = arith.constant 0 : index
    %c0_32 = arith.constant 0 : index
    %61 = vector.load %arg3[%c5_30, %c0_31, %c0_32] : memref<9x8x256xf32, #tpu.memory_space<vmem>>, vector<1x8x256xf32>
    %62 = vector.shape_cast %61 : vector<1x8x256xf32> to vector<8x256xf32>
    %63 = arith.mulf %60, %62 : vector<8x256xf32>
    %c241_i32 = arith.constant 241 : i32
    %64 = tpu.dynamic_rotate %40 by %c241_i32 dim 1 : vector<8x256xf32>, i32 -> vector<8x256xf32>
    %c6 = arith.constant 6 : index
    %c0_33 = arith.constant 0 : index
    %c0_34 = arith.constant 0 : index
    %65 = vector.load %arg3[%c6, %c0_33, %c0_34] : memref<9x8x256xf32, #tpu.memory_space<vmem>>, vector<1x8x256xf32>
    %66 = vector.shape_cast %65 : vector<1x8x256xf32> to vector<8x256xf32>
    %67 = arith.mulf %64, %66 : vector<8x256xf32>
    %c240_i32 = arith.constant 240 : i32
    %68 = tpu.dynamic_rotate %40 by %c240_i32 dim 1 : vector<8x256xf32>, i32 -> vector<8x256xf32>
    %c7 = arith.constant 7 : index
    %c0_35 = arith.constant 0 : index
    %c0_36 = arith.constant 0 : index
    %69 = vector.load %arg3[%c7, %c0_35, %c0_36] : memref<9x8x256xf32, #tpu.memory_space<vmem>>, vector<1x8x256xf32>
    %70 = vector.shape_cast %69 : vector<1x8x256xf32> to vector<8x256xf32>
    %71 = arith.mulf %68, %70 : vector<8x256xf32>
    %c239_i32 = arith.constant 239 : i32
    %72 = tpu.dynamic_rotate %40 by %c239_i32 dim 1 : vector<8x256xf32>, i32 -> vector<8x256xf32>
    %c8_37 = arith.constant 8 : index
    %c0_38 = arith.constant 0 : index
    %c0_39 = arith.constant 0 : index
    %73 = vector.load %arg3[%c8_37, %c0_38, %c0_39] : memref<9x8x256xf32, #tpu.memory_space<vmem>>, vector<1x8x256xf32>
    %74 = vector.shape_cast %73 : vector<1x8x256xf32> to vector<8x256xf32>
    %75 = arith.mulf %72, %74 : vector<8x256xf32>
    %76 = tpu.concatenate %44, %48, %52, %56, %59, %63, %67, %71, %75 in 0 : vector<8x256xf32>, vector<8x256xf32>, vector<8x256xf32>, vector<8x256xf32>, vector<8x256xf32>, vector<8x256xf32>, vector<8x256xf32>, vector<8x256xf32>, vector<8x256xf32> -> vector<72x256xf32>
    %cst_40 = arith.constant dense<0.000000e+00> : vector<4x256xf32>
    %77 = tpu.matmul %5, %76, %cst_40 {dimension_numbers = #tpu.dot_dimension_numbers<[1], [0], [0], [1], [0, 0, 1, 1], [], []>} : vector<4x72xf32>, vector<72x256xf32>, vector<4x256xf32> -> vector<4x256xf32>
    %78 = vector.broadcast %10 : vector<4x1xf32> to vector<4x256xf32>
    %79 = arith.addf %77, %78 : vector<4x256xf32>
    %cst_41 = arith.constant dense<0.000000e+00> : vector<4xf32>
    %80 = vector.multi_reduction <add>, %79, %cst_41 [1] : vector<4x256xf32> to vector<4xf32>
    %81 = vector.shape_cast %80 : vector<4xf32> to vector<4x1xf32>
    %cst_42 = arith.constant 3.906250e-03 : f32
    %82 = vector.broadcast %cst_42 : f32 to vector<4x1xf32>
    %83 = arith.mulf %81, %82 : vector<4x1xf32>
    %84 = vector.broadcast %83 : vector<4x1xf32> to vector<4x256xf32>
    %85 = arith.subf %79, %84 : vector<4x256xf32>
    %86 = arith.mulf %85, %85 : vector<4x256xf32>
    %cst_43 = arith.constant dense<0.000000e+00> : vector<4xf32>
    %87 = vector.multi_reduction <add>, %86, %cst_43 [1] : vector<4x256xf32> to vector<4xf32>
    %88 = vector.shape_cast %87 : vector<4xf32> to vector<4x1xf32>
    %cst_44 = arith.constant 3.906250e-03 : f32
    %89 = vector.broadcast %cst_44 : f32 to vector<4x1xf32>
    %90 = arith.mulf %88, %89 : vector<4x1xf32>
    %cst_45 = arith.constant 9.99999974E-6 : f32
    %91 = vector.broadcast %cst_45 : f32 to vector<4x1xf32>
    %92 = arith.addf %90, %91 : vector<4x1xf32>
    %93 = math.rsqrt %92 : vector<4x1xf32>
    %94 = vector.broadcast %93 : vector<4x1xf32> to vector<4x256xf32>
    %95 = arith.mulf %85, %94 : vector<4x256xf32>
    %96 = vector.broadcast %11 : vector<4x1xf32> to vector<4x256xf32>
    %97 = arith.mulf %95, %96 : vector<4x256xf32>
    %98 = vector.broadcast %12 : vector<4x1xf32> to vector<4x256xf32>
    %99 = arith.addf %97, %98 : vector<4x256xf32>
    %cst_46 = arith.constant 0.000000e+00 : f32
    %100 = vector.broadcast %cst_46 : f32 to vector<4x256xf32>
    %101 = arith.maximumf %99, %100 : vector<4x256xf32>
    %c1_47 = arith.constant 1 : index
    %c0_48 = arith.constant 0 : index
    %102 = vector.load %arg6[%c1_47, %c0_48] : memref<8x256xf32, #tpu.memory_space<vmem>>, vector<4x256xf32>
    tpu.vector_store %arg6[%c1_47, %c0_48], %101 {strides = array<i32>} : memref<8x256xf32, #tpu.memory_space<vmem>>, vector<4x256xf32>,
    %c0_49 = arith.constant 0 : index
    %c0_50 = arith.constant 0 : index
    %103 = vector.load %arg6[%c0_49, %c0_50] : memref<8x256xf32, #tpu.memory_space<vmem>>, vector<8x256xf32>
    %c17_i32_51 = arith.constant 17 : i32
    %104 = tpu.dynamic_rotate %103 by %c17_i32_51 dim 1 : vector<8x256xf32>, i32 -> vector<8x256xf32>
    %c0_52 = arith.constant 0 : index
    %c0_53 = arith.constant 0 : index
    %c0_54 = arith.constant 0 : index
    %105 = vector.load %arg3[%c0_52, %c0_53, %c0_54] : memref<9x8x256xf32, #tpu.memory_space<vmem>>, vector<1x8x256xf32>
    %106 = vector.shape_cast %105 : vector<1x8x256xf32> to vector<8x256xf32>
    %107 = arith.mulf %104, %106 : vector<8x256xf32>
    %c16_i32_55 = arith.constant 16 : i32
    %108 = tpu.dynamic_rotate %103 by %c16_i32_55 dim 1 : vector<8x256xf32>, i32 -> vector<8x256xf32>
    %c1_56 = arith.constant 1 : index
    %c0_57 = arith.constant 0 : index
    %c0_58 = arith.constant 0 : index
    %109 = vector.load %arg3[%c1_56, %c0_57, %c0_58] : memref<9x8x256xf32, #tpu.memory_space<vmem>>, vector<1x8x256xf32>
    %110 = vector.shape_cast %109 : vector<1x8x256xf32> to vector<8x256xf32>
    %111 = arith.mulf %108, %110 : vector<8x256xf32>
    %c15_i32_59 = arith.constant 15 : i32
    %112 = tpu.dynamic_rotate %103 by %c15_i32_59 dim 1 : vector<8x256xf32>, i32 -> vector<8x256xf32>
    %c2_60 = arith.constant 2 : index
    %c0_61 = arith.constant 0 : index
    %c0_62 = arith.constant 0 : index
    %113 = vector.load %arg3[%c2_60, %c0_61, %c0_62] : memref<9x8x256xf32, #tpu.memory_space<vmem>>, vector<1x8x256xf32>
    %114 = vector.shape_cast %113 : vector<1x8x256xf32> to vector<8x256xf32>
    %115 = arith.mulf %112, %114 : vector<8x256xf32>
    %c1_i32_63 = arith.constant 1 : i32
    %116 = tpu.dynamic_rotate %103 by %c1_i32_63 dim 1 : vector<8x256xf32>, i32 -> vector<8x256xf32>
    %c3_64 = arith.constant 3 : index
    %c0_65 = arith.constant 0 : index
    %c0_66 = arith.constant 0 : index
    %117 = vector.load %arg3[%c3_64, %c0_65, %c0_66] : memref<9x8x256xf32, #tpu.memory_space<vmem>>, vector<1x8x256xf32>
    %118 = vector.shape_cast %117 : vector<1x8x256xf32> to vector<8x256xf32>
    %119 = arith.mulf %116, %118 : vector<8x256xf32>
    %c4_67 = arith.constant 4 : index
    %c0_68 = arith.constant 0 : index
    %c0_69 = arith.constant 0 : index
    %120 = vector.load %arg3[%c4_67, %c0_68, %c0_69] : memref<9x8x256xf32, #tpu.memory_space<vmem>>, vector<1x8x256xf32>
    %121 = vector.shape_cast %120 : vector<1x8x256xf32> to vector<8x256xf32>
    %122 = arith.mulf %103, %121 : vector<8x256xf32>
    %c255_i32_70 = arith.constant 255 : i32
    %123 = tpu.dynamic_rotate %103 by %c255_i32_70 dim 1 : vector<8x256xf32>, i32 -> vector<8x256xf32>
    %c5_71 = arith.constant 5 : index
    %c0_72 = arith.constant 0 : index
    %c0_73 = arith.constant 0 : index
    %124 = vector.load %arg3[%c5_71, %c0_72, %c0_73] : memref<9x8x256xf32, #tpu.memory_space<vmem>>, vector<1x8x256xf32>
    %125 = vector.shape_cast %124 : vector<1x8x256xf32> to vector<8x256xf32>
    %126 = arith.mulf %123, %125 : vector<8x256xf32>
    %c241_i32_74 = arith.constant 241 : i32
    %127 = tpu.dynamic_rotate %103 by %c241_i32_74 dim 1 : vector<8x256xf32>, i32 -> vector<8x256xf32>
    %c6_75 = arith.constant 6 : index
    %c0_76 = arith.constant 0 : index
    %c0_77 = arith.constant 0 : index
    %128 = vector.load %arg3[%c6_75, %c0_76, %c0_77] : memref<9x8x256xf32, #tpu.memory_space<vmem>>, vector<1x8x256xf32>
    %129 = vector.shape_cast %128 : vector<1x8x256xf32> to vector<8x256xf32>
    %130 = arith.mulf %127, %129 : vector<8x256xf32>
    %c240_i32_78 = arith.constant 240 : i32
    %131 = tpu.dynamic_rotate %103 by %c240_i32_78 dim 1 : vector<8x256xf32>, i32 -> vector<8x256xf32>
    %c7_79 = arith.constant 7 : index
    %c0_80 = arith.constant 0 : index
    %c0_81 = arith.constant 0 : index
    %132 = vector.load %arg3[%c7_79, %c0_80, %c0_81] : memref<9x8x256xf32, #tpu.memory_space<vmem>>, vector<1x8x256xf32>
    %133 = vector.shape_cast %132 : vector<1x8x256xf32> to vector<8x256xf32>
    %134 = arith.mulf %131, %133 : vector<8x256xf32>
    %c239_i32_82 = arith.constant 239 : i32
    %135 = tpu.dynamic_rotate %103 by %c239_i32_82 dim 1 : vector<8x256xf32>, i32 -> vector<8x256xf32>
    %c8_83 = arith.constant 8 : index
    %c0_84 = arith.constant 0 : index
    %c0_85 = arith.constant 0 : index
    %136 = vector.load %arg3[%c8_83, %c0_84, %c0_85] : memref<9x8x256xf32, #tpu.memory_space<vmem>>, vector<1x8x256xf32>
    %137 = vector.shape_cast %136 : vector<1x8x256xf32> to vector<8x256xf32>
    %138 = arith.mulf %135, %137 : vector<8x256xf32>
    %139 = tpu.concatenate %107, %111, %115, %119, %122, %126, %130, %134, %138 in 0 : vector<8x256xf32>, vector<8x256xf32>, vector<8x256xf32>, vector<8x256xf32>, vector<8x256xf32>, vector<8x256xf32>, vector<8x256xf32>, vector<8x256xf32>, vector<8x256xf32> -> vector<72x256xf32>
    %cst_86 = arith.constant dense<0.000000e+00> : vector<4x256xf32>
    %140 = tpu.matmul %6, %139, %cst_86 {dimension_numbers = #tpu.dot_dimension_numbers<[1], [0], [0], [1], [0, 0, 1, 1], [], []>} : vector<4x72xf32>, vector<72x256xf32>, vector<4x256xf32> -> vector<4x256xf32>
    %141 = vector.broadcast %13 : vector<4x1xf32> to vector<4x256xf32>
    %142 = arith.addf %140, %141 : vector<4x256xf32>
    %cst_87 = arith.constant dense<0.000000e+00> : vector<4xf32>
    %143 = vector.multi_reduction <add>, %142, %cst_87 [1] : vector<4x256xf32> to vector<4xf32>
    %144 = vector.shape_cast %143 : vector<4xf32> to vector<4x1xf32>
    %cst_88 = arith.constant 3.906250e-03 : f32
    %145 = vector.broadcast %cst_88 : f32 to vector<4x1xf32>
    %146 = arith.mulf %144, %145 : vector<4x1xf32>
    %147 = vector.broadcast %146 : vector<4x1xf32> to vector<4x256xf32>
    %148 = arith.subf %142, %147 : vector<4x256xf32>
    %149 = arith.mulf %148, %148 : vector<4x256xf32>
    %cst_89 = arith.constant dense<0.000000e+00> : vector<4xf32>
    %150 = vector.multi_reduction <add>, %149, %cst_89 [1] : vector<4x256xf32> to vector<4xf32>
    %151 = vector.shape_cast %150 : vector<4xf32> to vector<4x1xf32>
    %cst_90 = arith.constant 3.906250e-03 : f32
    %152 = vector.broadcast %cst_90 : f32 to vector<4x1xf32>
    %153 = arith.mulf %151, %152 : vector<4x1xf32>
    %cst_91 = arith.constant 9.99999974E-6 : f32
    %154 = vector.broadcast %cst_91 : f32 to vector<4x1xf32>
    %155 = arith.addf %153, %154 : vector<4x1xf32>
    %156 = math.rsqrt %155 : vector<4x1xf32>
    %157 = vector.broadcast %156 : vector<4x1xf32> to vector<4x256xf32>
    %158 = arith.mulf %148, %157 : vector<4x256xf32>
    %159 = vector.broadcast %14 : vector<4x1xf32> to vector<4x256xf32>
    %160 = arith.mulf %158, %159 : vector<4x256xf32>
    %161 = vector.broadcast %15 : vector<4x1xf32> to vector<4x256xf32>
    %162 = arith.addf %160, %161 : vector<4x256xf32>
    %c0_92 = arith.constant 0 : index
    %c0_93 = arith.constant 0 : index
    %163 = vector.load %arg5[%c0_92, %c0_93] : memref<4x256xf32, #tpu.memory_space<vmem>>, vector<4x256xf32>
    tpu.vector_store %arg5[%c0_92, %c0_93], %162 {strides = array<i32>} : memref<4x256xf32, #tpu.memory_space<vmem>>, vector<4x256xf32>,
    return
  }
  func.func @transform_0(%arg0: i32) -> i32 {
    %c0_i32 = arith.constant 0 : i32
    %c0_i32_0 = arith.constant 0 : i32
    return %c0_i32 : i32
  }
  func.func @transform_1(%arg0: i32) -> (i32, i32) {
    %c0_i32 = arith.constant 0 : i32
    %c0_i32_0 = arith.constant 0 : i32
    return %c0_i32, %arg0 : i32, i32
  }
  func.func @transform_2(%arg0: i32) -> (i32, i32, i32) {
    %c0_i32 = arith.constant 0 : i32
    %c0_i32_0 = arith.constant 0 : i32
    %c0_i32_1 = arith.constant 0 : i32
    %c0_i32_2 = arith.constant 0 : i32
    return %c0_i32, %c0_i32_0, %c0_i32_1 : i32, i32, i32
  }
  func.func @transform_3(%arg0: i32) -> (i32, i32) {
    %c0_i32 = arith.constant 0 : i32
    %c0_i32_0 = arith.constant 0 : i32
    %c0_i32_1 = arith.constant 0 : i32
    return %c0_i32, %c0_i32_0 : i32, i32
  }
  func.func @transform_4(%arg0: i32) -> (i32, i32) {
    %c0_i32 = arith.constant 0 : i32
    %c0_i32_0 = arith.constant 0 : i32
    return %c0_i32, %arg0 : i32, i32
  }
}

</mosaic_0001>

<llo_original>
// kernel: tpu_custom_call.1
$region0: #{tpu_custom_call.1}
  #allocation0 [shape = 'u32[]', space=smem, size = 0x4, offset = 0x4, fixed_abs, tag = 'smem constant byte address 0x4 - core index']
  #allocation1 [shape = 'u32[144,128]{1,0:T(1,128)}', space=vmem, size = 0x12000, scoped, tag = 'internal scratch']
  #allocation2 [shape = 'f32[8,256]{1,0:T(8,128)}', space=vmem, size = 0x2000, scoped, tag = 'scratch operand']
  #allocation3 [shape = 'f32[1]{0:T(128)S(6)}', space=smem, size = 0x200, scoped, tag = 'scoped memory for tpu_custom_call.1']
  %s0 = inlined_call_operand.<no memory space> [shape: f32[1], index: 0, kind: input, shape index: {}]
  %s1 = inlined_call_operand.hbm [shape: f32[4,512], index: 1, kind: input, shape index: {}]
  %s2 = inlined_call_operand.hbm [shape: f32[9,8,256], index: 2, kind: input, shape index: {}]
  %s3 = inlined_call_operand.hbm [shape: f32[24,128], index: 3, kind: input, shape index: {}]
  %s4 = inlined_call_operand.hbm [shape: f32[4,512], index: 4, kind: output, shape index: {}]
  %s5 = sld [smem:[#allocation0]]
  $region61: #{tpu_custom_call.1} parent=0
    _
  %s7 = ssub.s32 1, %s5
  %s8 = scalar_select 0, %s7, %s5
  %9 = sst [smem:[#allocation3]] %s0
  $region1: #{tpu_custom_call.1} parent=0
    #allocation4 [shape = 'u8[8192]{0}', space=vmem, size = 0x2000, scoped, tag = 'input window, operand 1']
    #allocation5 [shape = 's32[2]{0}', space=sflag, size = 0x8, scoped, tag = 'scoped memory for tpu_custom_call.1']
    #allocation6 [shape = 's32[2]{0}', space=sflag, size = 0x8, scoped, tag = 'scoped memory for tpu_custom_call.1']
    #allocation7 [shape = 'u8[73728]{0}', space=vmem, size = 0x12000, scoped, tag = 'input window, operand 2, single buffered']
    #allocation8 [shape = 's32[1]{0}', space=sflag, size = 0x4, scoped, tag = 'scoped memory for tpu_custom_call.1']
    #allocation9 [shape = 'u8[12288]{0}', space=vmem, size = 0x3000, scoped, tag = 'input window, operand 3, single buffered']
    #allocation10 [shape = 'u8[8192]{0}', space=vmem, size = 0x2000, scoped, tag = 'output window, operand 0']
    %10 = vsyncpa [#allocation5], 0
    %s11 = scalar_lea.sflag [#allocation5], 1
    %12 = vsyncpa %s11, 0
    %13 = vsyncpa [#allocation8], 0
    %14 = vsyncpa [#allocation6], 0
    %s15 = scalar_lea.sflag [#allocation6], 1
    %16 = vsyncpa %s15, 0
    loop: start=0, step=1, limit=4
    $region2: #{tpu_custom_call.1} parent=1 // loop_pre_header
      _
    $region3: #{tpu_custom_call.1} parent=1 // loop_header
      %s18 = sphi 0, %s22
      %p19 = scmp.ge.s32.totalorder %s18, 4
      %s26 = sphi 0, %s26
      %s28 = sphi 0, %s26
      %s29 = sphi 0, %s28
      %s43 = sphi 0, %s29
      %s49 = sphi 0, %s51
      %s52 = sphi 0, %s49
      %s53 = sphi 0, %s52
      %s69 = sphi 0, %s53
      %s73 = sphi 0, %s73
      %s75 = sphi 0, %s73
      %s76 = sphi 0, %s75
      %s90 = sphi 0, %s76
      %s94 = sphi 0, %s94
      %s96 = sphi 0, %s94
      %s97 = sphi 0, %s96
      %s111 = sphi 0, %s97
      %s117 = sphi 0, %s119
      %s120 = sphi 0, %s117
      %s121 = sphi 0, %s120
      %s137 = sphi 0, %s121
    $region4: #{tpu_custom_call.1} parent=1 // loop_header_branch
      %21 = sbr.rel (%p19) target = $region8
    $region5: #{tpu_custom_call.1} parent=1 // loop_body
      %s23 = ssub.s32 %s18, 1
      %s24 = ssub.s32 %s18, 2
      %s25 = sadd.s32 %s18, 1
      %s27 = sadd.s32 %s26, 1
      %p30 = scmp.eq.s32.totalorder %s18, 1
      %p31 = scmp.ne.s32.totalorder %s26, %s28
      %p32 = scmp.eq.s32.totalorder %s18, 0
      %p33 = por %p31, %p32
      %p34 = scmp.ne.s32.totalorder %s26, %s28
      %p35 = scmp.eq.s32.totalorder %s23, 1
      %p36 = por %p34, %p35
      %p37 = scmp.ne.s32.totalorder %s28, %s29
      %p38 = scmp.eq.s32.totalorder %s23, 0
      %p39 = por %p37, %p38
      %p40 = scmp.ne.s32.totalorder %s28, %s29
      %p41 = scmp.eq.s32.totalorder %s24, 1
      %p42 = por %p40, %p41
      %p44 = scmp.ne.s32.totalorder %s29, %s43
      %p45 = scmp.eq.s32.totalorder %s24, 0
      %p46 = por %p44, %p45
      %s47 = ssub.s32 %s18, %s25
      %p48 = scmp.eq.s32.totalorder %s47, 0
      %s50 = sadd.s32 %s49, 1
      %s51 = scalar_select %p48, %s49, %s50
      %p54 = pneg %p48
      %p55 = scmp.eq.s32.totalorder %s18, 1
      %p56 = por %p54, %p55
      %p57 = scmp.ne.s32.totalorder %s49, %s52
      %p58 = scmp.eq.s32.totalorder %s18, 0
      %p59 = por %p57, %p58
      %p60 = scmp.ne.s32.totalorder %s49, %s52
      %p61 = scmp.eq.s32.totalorder %s23, 1
      %p62 = por %p60, %p61
      %p63 = scmp.ne.s32.totalorder %s52, %s53
      %p64 = scmp.eq.s32.totalorder %s23, 0
      %p65 = por %p63, %p64
      %p66 = scmp.ne.s32.totalorder %s52, %s53
      %p67 = scmp.eq.s32.totalorder %s24, 1
      %p68 = por %p66, %p67
      %p70 = scmp.ne.s32.totalorder %s53, %s69
      %p71 = scmp.eq.s32.totalorder %s24, 0
      %p72 = por %p70, %p71
      %s74 = sadd.s32 %s73, 1
      %p77 = scmp.eq.s32.totalorder %s18, 1
      %p78 = scmp.ne.s32.totalorder %s73, %s75
      %p79 = scmp.eq.s32.totalorder %s18, 0
      %p80 = por %p78, %p79
      %p81 = scmp.ne.s32.totalorder %s73, %s75
      %p82 = scmp.eq.s32.totalorder %s23, 1
      %p83 = por %p81, %p82
      %p84 = scmp.ne.s32.totalorder %s75, %s76
      %p85 = scmp.eq.s32.totalorder %s23, 0
      %p86 = por %p84, %p85
      %p87 = scmp.ne.s32.totalorder %s75, %s76
      %p88 = scmp.eq.s32.totalorder %s24, 1
      %p89 = por %p87, %p88
      %p91 = scmp.ne.s32.totalorder %s76, %s90
      %p92 = scmp.eq.s32.totalorder %s24, 0
      %p93 = por %p91, %p92
      %s95 = sadd.s32 %s94, 1
      %p98 = scmp.eq.s32.totalorder %s18, 1
      %p99 = scmp.ne.s32.totalorder %s94, %s96
      %p100 = scmp.eq.s32.totalorder %s18, 0
      %p101 = por %p99, %p100
      %p102 = scmp.ne.s32.totalorder %s94, %s96
      %p103 = scmp.eq.s32.totalorder %s23, 1
      %p104 = por %p102, %p103
      %p105 = scmp.ne.s32.totalorder %s96, %s97
      %p106 = scmp.eq.s32.totalorder %s23, 0
      %p107 = por %p105, %p106
      %p108 = scmp.ne.s32.totalorder %s96, %s97
      %p109 = scmp.eq.s32.totalorder %s24, 1
      %p110 = por %p108, %p109
      %p112 = scmp.ne.s32.totalorder %s97, %s111
      %p113 = scmp.eq.s32.totalorder %s24, 0
      %p114 = por %p112, %p113
      %s115 = ssub.s32 %s18, %s25
      %p116 = scmp.eq.s32.totalorder %s115, 0
      %s118 = sadd.s32 %s117, 1
      %s119 = scalar_select %p116, %s117, %s118
      %p122 = pneg %p116
      %p123 = scmp.eq.s32.totalorder %s18, 1
      %p124 = por %p122, %p123
      %p125 = scmp.ne.s32.totalorder %s117, %s120
      %p126 = scmp.eq.s32.totalorder %s18, 0
      %p127 = por %p125, %p126
      %p128 = scmp.ne.s32.totalorder %s117, %s120
      %p129 = scmp.eq.s32.totalorder %s23, 1
      %p130 = por %p128, %p129
      %p131 = scmp.ne.s32.totalorder %s120, %s121
      %p132 = scmp.eq.s32.totalorder %s23, 0
      %p133 = por %p131, %p132
      %p134 = scmp.ne.s32.totalorder %s120, %s121
      %p135 = scmp.eq.s32.totalorder %s24, 1
      %p136 = por %p134, %p135
      %p138 = scmp.ne.s32.totalorder %s121, %s137
      %p139 = scmp.eq.s32.totalorder %s24, 0
      %p140 = por %p138, %p139
      %p141 = scmp.le.s32.totalorder 1, %s18
      %p142 = scmp.lt.s32.totalorder %s18, 3
      %p143 = pnand %p141, %p142
      %p144 = pneg %p143
      // Predicated region
      $region9: #{tpu_custom_call.1} parent=5 // pred_check
        _
      $region10: #{tpu_custom_call.1} parent=5 // pred_check_branch
        %146 = sbr.rel (%p143) target = $region12
      $region11: #{tpu_custom_call.1} parent=5 // pred_region
        %s147 = ssub.s32 %s18, 1
        // Predicated region
        $region13: #{tpu_custom_call.1} parent=11 // pred_check
          %p148 = pneg %p39
        $region14: #{tpu_custom_call.1} parent=11 // pred_check_branch
          %150 = sbr.rel (%p148) target = $region16
        $region15: #{tpu_custom_call.1} parent=11 // pred_region
          _
        $region16: #{tpu_custom_call.1} parent=11 // pred_fallthru
          _
        // Predicated region
        $region17: #{tpu_custom_call.1} parent=11 // pred_check
          %p151 = pneg %p86
        $region18: #{tpu_custom_call.1} parent=11 // pred_check_branch
          %153 = sbr.rel (%p151) target = $region20
        $region19: #{tpu_custom_call.1} parent=11 // pred_region
          %s155 = ssub.s32 2304, 2304
          %156 = vsyncadd [#allocation8], %s155
          %s157 = sshll.u32 [#allocation7], 4
          %s158 = int_to_ptr.vmem [resolvable:$true] %s157
          %163 = dma.hbm_to_vmem [thread:$0]  %s2, 2304, %s158, [#allocation8], 256, 256, 16
        $region20: #{tpu_custom_call.1} parent=11 // pred_fallthru
          _
        // Predicated region
        $region21: #{tpu_custom_call.1} parent=11 // pred_check
          %p164 = pneg %p107
        $region22: #{tpu_custom_call.1} parent=11 // pred_check_branch
          %166 = sbr.rel (%p164) target = $region24
        $region23: #{tpu_custom_call.1} parent=11 // pred_region
          %s168 = ssub.s32 384, 384
          %169 = vsyncadd [#allocation8], %s168
          %s170 = sshll.u32 [#allocation9], 4
          %s171 = int_to_ptr.vmem [resolvable:$true] %s170
          %176 = dma.hbm_to_vmem [thread:$0]  %s3, 384, %s171, [#allocation8], 128, 128, 8
        $region24: #{tpu_custom_call.1} parent=11 // pred_fallthru
          _
      $region12: #{tpu_custom_call.1} parent=5 // pred_fallthru
        _
      %p177 = scmp.lt.s32.totalorder %s18, 2
      // Predicated region
      $region25: #{tpu_custom_call.1} parent=5 // pred_check
        %p178 = pneg %p177
      $region26: #{tpu_custom_call.1} parent=5 // pred_check_branch
        %180 = sbr.rel (%p178) target = $region28
      $region27: #{tpu_custom_call.1} parent=5 // pred_region
        // Predicated region
        $region29: #{tpu_custom_call.1} parent=27 // pred_check
          %p181 = pneg %p59
        $region30: #{tpu_custom_call.1} parent=27 // pred_check_branch
          %183 = sbr.rel (%p181) target = $region32
        $region31: #{tpu_custom_call.1} parent=27 // pred_region
          %s184 = sand.u32 %s49, 1
          %s185 = scalar_lea.sflag [#allocation5], %s184
          %s186 = sand.u32 %s49, 1
          %s187 = smul.addr %s186, 8
          %s188 = scalar_lea.vmem [#allocation4], %s187
          %s189 = smul.u32 2, %s18
          %s191 = ssub.s32 128, 128
          %192 = vsyncadd %s185, %s191
          %s193 = smul.addr %s189, 64
          %s194 = scalar_lea.hbm %s1, %s193
          %s196 = sshll.u32 %s188, 4
          %s197 = int_to_ptr.vmem [resolvable:$true] %s196
          %199 = dma.hbm_to_vmem [thread:$0]  %s194, 128, %s197, %s185
        $region32: #{tpu_custom_call.1} parent=27 // pred_fallthru
          _
      $region28: #{tpu_custom_call.1} parent=5 // pred_fallthru
        _
      %p200 = scmp.le.s32.totalorder 1, %s18
      %p201 = scmp.lt.s32.totalorder %s18, 3
      %p202 = pnand %p200, %p201
      %p203 = pneg %p202
      // Predicated region
      $region33: #{tpu_custom_call.1} parent=5 // pred_check
        _
      $region34: #{tpu_custom_call.1} parent=5 // pred_check_branch
        %205 = sbr.rel (%p202) target = $region36
      $region35: #{tpu_custom_call.1} parent=5 // pred_region
        %s206 = ssub.s32 %s18, 1
        %s207 = sand.u32 %s52, 1
        %s208 = scalar_lea.sflag [#allocation5], %s207
        %s209 = sand.u32 %s52, 1
        %s210 = smul.addr %s209, 8
        %s211 = scalar_lea.vmem [#allocation4], %s210
        // Predicated region
        $region37: #{tpu_custom_call.1} parent=35 // pred_check
          %p212 = pneg %p65
        $region38: #{tpu_custom_call.1} parent=35 // pred_check_branch
          %214 = sbr.rel (%p212) target = $region40
        $region39: #{tpu_custom_call.1} parent=35 // pred_region
          %215 = dma.done %s208, 128
        $region40: #{tpu_custom_call.1} parent=35 // pred_fallthru
          _
        // Predicated region
        $region41: #{tpu_custom_call.1} parent=35 // pred_check
          %p216 = pneg %p86
        $region42: #{tpu_custom_call.1} parent=35 // pred_check_branch
          %218 = sbr.rel (%p216) target = $region44
        $region43: #{tpu_custom_call.1} parent=35 // pred_region
          %219 = dma.done [#allocation8], 2304
        $region44: #{tpu_custom_call.1} parent=35 // pred_fallthru
          _
        // Predicated region
        $region45: #{tpu_custom_call.1} parent=35 // pred_check
          %p220 = pneg %p107
        $region46: #{tpu_custom_call.1} parent=35 // pred_check_branch
          %222 = sbr.rel (%p220) target = $region48
        $region47: #{tpu_custom_call.1} parent=35 // pred_region
          %223 = dma.done [#allocation8], 384
        $region48: #{tpu_custom_call.1} parent=35 // pred_fallthru
          _
        %p224 = pneg %p39
        %p225 = pneg %p36
        %s226 = sand.u32 %s52, 1
        %s227 = scalar_lea.sflag [#allocation5], %s226
        %s228 = sand.u32 %s52, 1
        %s229 = smul.addr %s228, 8
        %s230 = scalar_lea.vmem [#allocation4], %s229
        %p231 = pneg %p65
        %p232 = pneg %p62
        %p233 = pneg %p86
        %p234 = pneg %p83
        %p235 = pneg %p107
        %p236 = pneg %p104
        %p237 = pneg %p133
        %p238 = pneg %p130
        %s239 = sand.u32 %s120, 1
        %s240 = scalar_lea.sflag [#allocation6], %s239
        %s241 = sand.u32 %s120, 1
        %s242 = smul.addr %s241, 8
        %s243 = scalar_lea.vmem [#allocation10], %s242
        %s244 = smul.u32 2, %s23
        %s245 = smul.u32 2, %s23
        %s246 = sld [smem:[#allocation3]]
        %v247 = vstv %s246
        %v248 = vlaneseq
        %vm249 = vcmp.ge.s32.totalorder %v248, 0
        %vm250 = vcmp.lt.s32.totalorder %v248, 256
        %vm251 = vmand %vm249, %vm250
        %252 = vst.msk [vmem:[#allocation2] ss:$8 sm:$0x3] %vm251, %v247
        %253 = vst.msk [vmem:[#allocation2] ss:$8 sm:$0x0] %vm251, %v247
        %254 = vst [vmem:[#allocation2] sm:$0xe0] 0.0
        %255 = vst [vmem:[#allocation2 + $0x8] sm:$0xe0] 0.0
        %v256 = vld [vmem:[#allocation9] sm:$0xf]
        %v257 = vld [vmem:[#allocation9 + $0x8] sm:$0xf]
        %v258 = vld [vmem:[#allocation9 + $0x10] sm:$0xf]
        %v259 = vld [vmem:[%s211] sm:$0xff]
        %v261 = vcombine.high %v259, %v259
        %vm263 = vcmask 1043456
        %v264 = vsel %vm263, %v259, 0.0
        %v265 = vsel %vm263, %v261, 0.0
        %v266 = vadd.f32 %v264, %v265
        %267 = vadd.xlane.f32.xlu0 %v266
        %v268 = vpop.xlane.xlu0 %267
        %v269 = vmul.f32 %v268, 0.00390625
        %v272 = vunpack.c.l.s4 839922192
        %v273 = vunpack.c.0.s8 %v272
        %v274 = vlaneseq
        %v275 = vshrl.u32 %v274, 7
        %v276 = vsub.s32 %v273, %v275
        %v277 = vrot.slane %v269, %v276
        %v279 = vsub.f32 %v259, %v277
        %v280 = vmul.f32 %v279, %v279
        %v282 = vcombine.high %v280, %v280
        %v284 = vsel %vm263, %v280, 0.0
        %v285 = vsel %vm263, %v282, 0.0
        %v286 = vadd.f32 %v284, %v285
        %287 = vadd.xlane.f32.xlu0 %v286
        %v288 = vpop.xlane.xlu0 %287
        %v289 = vmul.f32 %v288, 0.00390625
        %v290 = vadd.f32 %v289, 1e-05
        %v291 = vrsqrt.pop %v290
        %v294 = vunpack.c.l.s4 839922192
        %v295 = vunpack.c.0.s8 %v294
        %v296 = vlaneseq
        %v297 = vshrl.u32 %v296, 7
        %v298 = vsub.s32 %v295, %v297
        %v299 = vrot.slane %v291, %v298
        %v301 = vmul.f32 %v279, %v299
        %303 = vset.pattern.permute.xlu0 0
        %304 = vperm.xlu0 %303, %v258
        %v305 = vpop.permute.xlu0 %304
        %v307 = vunpack.c.l.s4 839922192
        %v308 = vunpack.c.0.s8 %v307
        %v309 = vlaneseq
        %v310 = vshrl.u32 %v309, 7
        %v311 = vsub.s32 %v308, %v310
        %v312 = vrot.slane %v305, %v311
        %v314 = vmul.f32 %v301, %v312
        %315 = vset.pattern.permute.xlu0 1
        %316 = vperm.xlu0 %315, %v258
        %v317 = vpop.permute.xlu0 %316
        %v319 = vunpack.c.l.s4 839922192
        %v320 = vunpack.c.0.s8 %v319
        %v321 = vlaneseq
        %v322 = vshrl.u32 %v321, 7
        %v323 = vsub.s32 %v320, %v322
        %v324 = vrot.slane %v317, %v323
        %v326 = vadd.f32 %v314, %v324
        %v327 = vmax.f32 %v326, 0.0
        %v329 = vcombine.high %v327, %v327
        %v330 = vrot.slane %v327, 7
        %v331 = vrot.slane %v329, 7
        %334 = vst [vmem:[#allocation2] sm:$0x1e] %v330
        %335 = vst [vmem:[#allocation2 + $0x8] sm:$0x1e] %v331
        %v336 = vld [vmem:[#allocation2] sm:$0xff]
        %v337 = vld [vmem:[#allocation2 + $0x8] sm:$0xff]
        %338 = vrot.lane.b32.xlu0 %v336, 17
        %v339 = vpop.permute.xlu0 %338
        %340 = vrot.lane.b32.xlu0 %v337, 17
        %v341 = vpop.permute.xlu0 %340
        %v342 = vlaneseq
        %v343 = vand.u32 %v342, 127
        %vm344 = vcmp.lt.s32.totalorder %v343, 17
        %v345 = vsel %vm344, %v339, %v341
        %v346 = vsel %vm344, %v341, %v339
        %v347 = vld [vmem:[#allocation7] sm:$0xff]
        %v348 = vld [vmem:[#allocation7 + $0x8] sm:$0xff]
        %v349 = vmul.f32 %v346, %v347
        %v350 = vmul.f32 %v345, %v348
        %351 = vrot.lane.b32.xlu0 %v336, 16
        %v352 = vpop.permute.xlu0 %351
        %353 = vrot.lane.b32.xlu0 %v337, 16
        %v354 = vpop.permute.xlu0 %353
        %vm355 = vcmp.lt.s32.totalorder %v343, 16
        %v356 = vsel %vm355, %v352, %v354
        %v357 = vsel %vm355, %v354, %v352
        %s358 = scalar_lea.vmem [#allocation7], 16
        %v359 = vld [vmem:[%s358] sm:$0xff]
        %v360 = vld [vmem:[%s358 + $0x8] sm:$0xff]
        %v361 = vmul.f32 %v357, %v359
        %v362 = vmul.f32 %v356, %v360
        %363 = vrot.lane.b32.xlu0 %v336, 15
        %v364 = vpop.permute.xlu0 %363
        %365 = vrot.lane.b32.xlu0 %v337, 15
        %v366 = vpop.permute.xlu0 %365
        %vm367 = vcmp.lt.s32.totalorder %v343, 15
        %v368 = vsel %vm367, %v364, %v366
        %v369 = vsel %vm367, %v366, %v364
        %s370 = scalar_lea.vmem [#allocation7], 32
        %v371 = vld [vmem:[%s370] sm:$0xff]
        %v372 = vld [vmem:[%s370 + $0x8] sm:$0xff]
        %v373 = vmul.f32 %v369, %v371
        %v374 = vmul.f32 %v368, %v372
        %375 = vrot.lane.b32.xlu0 %v336, 1
        %v376 = vpop.permute.xlu0 %375
        %377 = vrot.lane.b32.xlu0 %v337, 1
        %v378 = vpop.permute.xlu0 %377
        %vm379 = vcmp.lt.s32.totalorder %v343, 1
        %v380 = vsel %vm379, %v376, %v378
        %v381 = vsel %vm379, %v378, %v376
        %s382 = scalar_lea.vmem [#allocation7], 48
        %v383 = vld [vmem:[%s382] sm:$0xff]
        %v384 = vld [vmem:[%s382 + $0x8] sm:$0xff]
        %v385 = vmul.f32 %v381, %v383
        %v386 = vmul.f32 %v380, %v384
        %s387 = scalar_lea.vmem [#allocation7], 64
        %v388 = vld [vmem:[%s387] sm:$0xff]
        %v389 = vld [vmem:[%s387 + $0x8] sm:$0xff]
        %v390 = vmul.f32 %v336, %v388
        %v391 = vmul.f32 %v337, %v389
        %392 = vrot.lane.b32.xlu0 %v336, 127
        %v393 = vpop.permute.xlu0 %392
        %394 = vrot.lane.b32.xlu0 %v337, 127
        %v395 = vpop.permute.xlu0 %394
        %vm396 = vcmp.lt.s32.totalorder %v343, 127
        %v397 = vsel %vm396, %v393, %v395
        %v398 = vsel %vm396, %v395, %v393
        %s399 = scalar_lea.vmem [#allocation7], 80
        %v400 = vld [vmem:[%s399] sm:$0xff]
        %v401 = vld [vmem:[%s399 + $0x8] sm:$0xff]
        %v402 = vmul.f32 %v397, %v400
        %v403 = vmul.f32 %v398, %v401
        %404 = vrot.lane.b32.xlu0 %v336, 113
        %v405 = vpop.permute.xlu0 %404
        %406 = vrot.lane.b32.xlu0 %v337, 113
        %v407 = vpop.permute.xlu0 %406
        %vm408 = vcmp.lt.s32.totalorder %v343, 113
        %v409 = vsel %vm408, %v405, %v407
        %v410 = vsel %vm408, %v407, %v405
        %s411 = scalar_lea.vmem [#allocation7], 96
        %v412 = vld [vmem:[%s411] sm:$0xff]
        %v413 = vld [vmem:[%s411 + $0x8] sm:$0xff]
        %v414 = vmul.f32 %v409, %v412
        %v415 = vmul.f32 %v410, %v413
        %416 = vrot.lane.b32.xlu0 %v336, 112
        %v417 = vpop.permute.xlu0 %416
        %418 = vrot.lane.b32.xlu0 %v337, 112
        %v419 = vpop.permute.xlu0 %418
        %vm420 = vcmp.lt.s32.totalorder %v343, 112
        %v421 = vsel %vm420, %v417, %v419
        %v422 = vsel %vm420, %v419, %v417
        %s423 = scalar_lea.vmem [#allocation7], 112
        %v424 = vld [vmem:[%s423] sm:$0xff]
        %v425 = vld [vmem:[%s423 + $0x8] sm:$0xff]
        %v426 = vmul.f32 %v421, %v424
        %v427 = vmul.f32 %v422, %v425
        %428 = vrot.lane.b32.xlu0 %v336, 111
        %v429 = vpop.permute.xlu0 %428
        %430 = vrot.lane.b32.xlu0 %v337, 111
        %v431 = vpop.permute.xlu0 %430
        %vm432 = vcmp.lt.s32.totalorder %v343, 111
        %v433 = vsel %vm432, %v429, %v431
        %v434 = vsel %vm432, %v431, %v429
        %s435 = scalar_lea.vmem [#allocation7], 128
        %v436 = vld [vmem:[%s435] sm:$0xff]
        %v437 = vld [vmem:[%s435 + $0x8] sm:$0xff]
        %v438 = vmul.f32 %v433, %v436
        %v439 = vmul.f32 %v434, %v437
        %440 = vset.pattern.permute.xlu0 2
        %441 = vperm.xlu0 %440, %v258
        %v442 = vpop.permute.xlu0 %441
        %vm444 = vcmask 588800
        %v446 = vsel %vm444, %v256, 0
        %448 = vmatprep.subr.mxu0 %v350
        %449 = vmatpush1.msra.mxu0 %v349
        %450 = vmatprep.subr.mxu0 %v362
        %451 = vmatpush1.msra.mxu0 %v361
        %452 = vmatprep.subr.mxu0 %v374
        %453 = vmatpush1.msra.mxu0 %v373
        %454 = vmatprep.subr.mxu0 %v386
        %455 = vmatpush1.msra.mxu0 %v385
        %456 = vmatprep.subr.mxu0 %v391
        %457 = vmatpush1.msra.mxu0 %v390
        %458 = vmatprep.subr.mxu0 %v403
        %459 = vmatpush1.msra.mxu0 %v402
        %460 = vmatprep.subr.mxu0 %v415
        %461 = vmatpush1.msra.mxu0 %v414
        %462 = vmatprep.subr.mxu0 %v427
        %463 = vmatpush1.msra.mxu0 %v426
        %464 = vmatprep.subr.mxu0 %v439
        %465 = vmatpush1.msra.mxu0 %v438
        %466 = vmatprep.subr.mxu0 0.0
        %467 = vmatpush1.msra.mxu0 0.0
        %468 = vmatprep.subr.mxu0 0.0
        %469 = vmatpush1.msra.mxu0 0.0
        %470 = vmatprep.subr.mxu0 0.0
        %471 = vmatpush1.msra.mxu0 0.0
        %472 = vmatprep.subr.mxu0 0.0
        %473 = vmatpush1.msra.mxu0 0.0
        %474 = vmatprep.subr.mxu0 0.0
        %475 = vmatpush1.msra.mxu0 0.0
        %476 = vmatprep.subr.mxu0 0.0
        %477 = vmatpush1.msra.mxu0 0.0
        %478 = vmatprep.subr.mxu0 0.0
        %479 = vmatpush1.msra.mxu0 0.0
        %480 = vmatprep.subr.mxu0 0.0
        %481 = vmatpush1.msra.mxu0 0.0
        %482 = vmatprep.subr.mxu0 0.0
        %483 = vmatpush1.msra.mxu0 0.0
        %484 = vmatprep.subr.mxu0 0.0
        %485 = vmatpush1.msra.mxu0 0.0
        %486 = vmatprep.subr.mxu0 0.0
        %487 = vmatpush1.msra.mxu0 0.0
        %488 = vmatprep.subr.mxu0 0.0
        %489 = vmatpush1.msra.mxu0 0.0
        %490 = vmatprep.subr.mxu0 0.0
        %491 = vmatpush1.msra.mxu0 0.0
        %492 = vmatprep.subr.mxu0 0.0
        %493 = vmatpush1.msra.mxu0 0.0
        %494 = vmatprep.subr.mxu0 0.0
        %495 = vmatpush1.msra.mxu0 0.0
        %496 = vmatprep.subr.mxu0 0.0
        %497 = vmatpush1.msra.mxu0 0.0
        %498 = vmatprep.subr.mxu0 0.0
        %499 = vmatpush1.msra.mxu0 0.0
        %500 = vmatprep.subr.mxu0 0.0
        %501 = vmatpush1.msra.mxu0 0.0
        %502 = vmatprep.subr.mxu0 0.0
        %503 = vmatpush1.msra.mxu0 0.0
        %504 = vmatprep.subr.mxu0 0.0
        %505 = vmatpush1.msra.mxu0 0.0
        %506 = vmatprep.subr.mxu0 0.0
        %507 = vmatpush1.msra.mxu0 0.0
        %508 = vmatprep.subr.mxu0 0.0
        %509 = vmatpush1.msra.mxu0 0.0
        %510 = vmatprep.subr.mxu0 0.0
        %511 = vmatpush1.msra.mxu0 0.0
        %512 = vmatprep.mubr.f32.mxu0 0.0
        %513 = vmatmul.mubr.f32.gmra.mrb[0].mxu0 %v446
        %v514 = vpop.f32.mrb[0].mxu0
        %v515 = vadd.f32 %v442, %v514
        %v516 = vpop.f32.mrb[0].mxu0
        %v517 = vadd.f32 %v442, %v516
        %518 = vdwg.mxu0
        %v519 = vsel %vm263, %v515, 0.0
        %v520 = vsel %vm263, %v517, 0.0
        %v521 = vadd.f32 %v519, %v520
        %522 = vadd.xlane.f32.xlu0 %v521
        %v523 = vpop.xlane.xlu0 %522
        %v524 = vmul.f32 %v523, 0.00390625
        %v525 = vsub.f32 %v515, %v524
        %v526 = vsub.f32 %v517, %v524
        %v527 = vmul.f32 %v525, %v525
        %v528 = vmul.f32 %v526, %v526
        %v529 = vsel %vm263, %v527, 0.0
        %v530 = vsel %vm263, %v528, 0.0
        %v531 = vadd.f32 %v529, %v530
        %532 = vadd.xlane.f32.xlu0 %v531
        %v533 = vpop.xlane.xlu0 %532
        %v534 = vmul.f32 %v533, 0.00390625
        %v535 = vadd.f32 %v534, 1e-05
        %v536 = vrsqrt.pop %v535
        %v537 = vmul.f32 %v525, %v536
        %v538 = vmul.f32 %v526, %v536
        %539 = vset.pattern.permute.xlu0 3
        %540 = vperm.xlu0 %539, %v258
        %v541 = vpop.permute.xlu0 %540
        %v543 = vmul.f32 %v537, %v541
        %v544 = vmul.f32 %v538, %v541
        %545 = vset.pattern.permute.xlu0 4
        %546 = vperm.xlu0 %545, %v258
        %v547 = vpop.permute.xlu0 %546
        %v549 = vadd.f32 %v543, %v547
        %v550 = vadd.f32 %v544, %v547
        %v551 = vmax.f32 %v549, 0.0
        %v552 = vmax.f32 %v550, 0.0
        %v555 = vrot.slane %v551, 7
        %v556 = vrot.slane %v552, 7
        %559 = vst [vmem:[#allocation2] sm:$0x1e] %v555
        %560 = vst [vmem:[#allocation2 + $0x8] sm:$0x1e] %v556
        %v561 = vld [vmem:[#allocation2] sm:$0xff]
        %v562 = vld [vmem:[#allocation2 + $0x8] sm:$0xff]
        %563 = vrot.lane.b32.xlu0 %v561, 17
        %v564 = vpop.permute.xlu0 %563
        %565 = vrot.lane.b32.xlu0 %v562, 17
        %v566 = vpop.permute.xlu0 %565
        %v567 = vsel %vm344, %v564, %v566
        %v568 = vsel %vm344, %v566, %v564
        %v569 = vld [vmem:[#allocation7] sm:$0xff]
        %v570 = vld [vmem:[#allocation7 + $0x8] sm:$0xff]
        %v571 = vmul.f32 %v568, %v569
        %v572 = vmul.f32 %v567, %v570
        %573 = vrot.lane.b32.xlu0 %v561, 16
        %v574 = vpop.permute.xlu0 %573
        %575 = vrot.lane.b32.xlu0 %v562, 16
        %v576 = vpop.permute.xlu0 %575
        %v577 = vsel %vm355, %v574, %v576
        %v578 = vsel %vm355, %v576, %v574
        %v579 = vld [vmem:[%s358] sm:$0xff]
        %v580 = vld [vmem:[%s358 + $0x8] sm:$0xff]
        %v581 = vmul.f32 %v578, %v579
        %v582 = vmul.f32 %v577, %v580
        %583 = vrot.lane.b32.xlu0 %v561, 15
        %v584 = vpop.permute.xlu0 %583
        %585 = vrot.lane.b32.xlu0 %v562, 15
        %v586 = vpop.permute.xlu0 %585
        %v587 = vsel %vm367, %v584, %v586
        %v588 = vsel %vm367, %v586, %v584
        %v589 = vld [vmem:[%s370] sm:$0xff]
        %v590 = vld [vmem:[%s370 + $0x8] sm:$0xff]
        %v591 = vmul.f32 %v588, %v589
        %v592 = vmul.f32 %v587, %v590
        %593 = vrot.lane.b32.xlu0 %v561, 1
        %v594 = vpop.permute.xlu0 %593
        %595 = vrot.lane.b32.xlu0 %v562, 1
        %v596 = vpop.permute.xlu0 %595
        %v597 = vsel %vm379, %v594, %v596
        %v598 = vsel %vm379, %v596, %v594
        %v599 = vld [vmem:[%s382] sm:$0xff]
        %v600 = vld [vmem:[%s382 + $0x8] sm:$0xff]
        %v601 = vmul.f32 %v598, %v599
        %v602 = vmul.f32 %v597, %v600
        %v603 = vld [vmem:[%s387] sm:$0xff]
        %v604 = vld [vmem:[%s387 + $0x8] sm:$0xff]
        %v605 = vmul.f32 %v561, %v603
        %v606 = vmul.f32 %v562, %v604
        %607 = vrot.lane.b32.xlu0 %v561, 127
        %v608 = vpop.permute.xlu0 %607
        %609 = vrot.lane.b32.xlu0 %v562, 127
        %v610 = vpop.permute.xlu0 %609
        %v611 = vsel %vm396, %v608, %v610
        %v612 = vsel %vm396, %v610, %v608
        %v613 = vld [vmem:[%s399] sm:$0xff]
        %v614 = vld [vmem:[%s399 + $0x8] sm:$0xff]
        %v615 = vmul.f32 %v611, %v613
        %v616 = vmul.f32 %v612, %v614
        %617 = vrot.lane.b32.xlu0 %v561, 113
        %v618 = vpop.permute.xlu0 %617
        %619 = vrot.lane.b32.xlu0 %v562, 113
        %v620 = vpop.permute.xlu0 %619
        %v621 = vsel %vm408, %v618, %v620
        %v622 = vsel %vm408, %v620, %v618
        %v623 = vld [vmem:[%s411] sm:$0xff]
        %v624 = vld [vmem:[%s411 + $0x8] sm:$0xff]
        %v625 = vmul.f32 %v621, %v623
        %v626 = vmul.f32 %v622, %v624
        %627 = vrot.lane.b32.xlu0 %v561, 112
        %v628 = vpop.permute.xlu0 %627
        %629 = vrot.lane.b32.xlu0 %v562, 112
        %v630 = vpop.permute.xlu0 %629
        %v631 = vsel %vm420, %v628, %v630
        %v632 = vsel %vm420, %v630, %v628
        %v633 = vld [vmem:[%s423] sm:$0xff]
        %v634 = vld [vmem:[%s423 + $0x8] sm:$0xff]
        %v635 = vmul.f32 %v631, %v633
        %v636 = vmul.f32 %v632, %v634
        %637 = vrot.lane.b32.xlu0 %v561, 111
        %v638 = vpop.permute.xlu0 %637
        %639 = vrot.lane.b32.xlu0 %v562, 111
        %v640 = vpop.permute.xlu0 %639
        %v641 = vsel %vm432, %v638, %v640
        %v642 = vsel %vm432, %v640, %v638
        %v643 = vld [vmem:[%s435] sm:$0xff]
        %v644 = vld [vmem:[%s435 + $0x8] sm:$0xff]
        %v645 = vmul.f32 %v641, %v643
        %v646 = vmul.f32 %v642, %v644
        %647 = vset.pattern.permute.xlu0 5
        %648 = vperm.xlu0 %647, %v258
        %v649 = vpop.permute.xlu0 %648
        %v652 = vsel %vm444, %v257, 0
        %654 = vmatprep.subr.mxu0 %v572
        %655 = vmatpush1.msra.mxu0 %v571
        %656 = vmatprep.subr.mxu0 %v582
        %657 = vmatpush1.msra.mxu0 %v581
        %658 = vmatprep.subr.mxu0 %v592
        %659 = vmatpush1.msra.mxu0 %v591
        %660 = vmatprep.subr.mxu0 %v602
        %661 = vmatpush1.msra.mxu0 %v601
        %662 = vmatprep.subr.mxu0 %v606
        %663 = vmatpush1.msra.mxu0 %v605
        %664 = vmatprep.subr.mxu0 %v616
        %665 = vmatpush1.msra.mxu0 %v615
        %666 = vmatprep.subr.mxu0 %v626
        %667 = vmatpush1.msra.mxu0 %v625
        %668 = vmatprep.subr.mxu0 %v636
        %669 = vmatpush1.msra.mxu0 %v635
        %670 = vmatprep.subr.mxu0 %v646
        %671 = vmatpush1.msra.mxu0 %v645
        %672 = vmatprep.subr.mxu0 0.0
        %673 = vmatpush1.msra.mxu0 0.0
        %674 = vmatprep.subr.mxu0 0.0
        %675 = vmatpush1.msra.mxu0 0.0
        %676 = vmatprep.subr.mxu0 0.0
        %677 = vmatpush1.msra.mxu0 0.0
        %678 = vmatprep.subr.mxu0 0.0
        %679 = vmatpush1.msra.mxu0 0.0
        %680 = vmatprep.subr.mxu0 0.0
        %681 = vmatpush1.msra.mxu0 0.0
        %682 = vmatprep.subr.mxu0 0.0
        %683 = vmatpush1.msra.mxu0 0.0
        %684 = vmatprep.subr.mxu0 0.0
        %685 = vmatpush1.msra.mxu0 0.0
        %686 = vmatprep.subr.mxu0 0.0
        %687 = vmatpush1.msra.mxu0 0.0
        %688 = vmatprep.subr.mxu0 0.0
        %689 = vmatpush1.msra.mxu0 0.0
        %690 = vmatprep.subr.mxu0 0.0
        %691 = vmatpush1.msra.mxu0 0.0
        %692 = vmatprep.subr.mxu0 0.0
        %693 = vmatpush1.msra.mxu0 0.0
        %694 = vmatprep.subr.mxu0 0.0
        %695 = vmatpush1.msra.mxu0 0.0
        %696 = vmatprep.subr.mxu0 0.0
        %697 = vmatpush1.msra.mxu0 0.0
        %698 = vmatprep.subr.mxu0 0.0
        %699 = vmatpush1.msra.mxu0 0.0
        %700 = vmatprep.subr.mxu0 0.0
        %701 = vmatpush1.msra.mxu0 0.0
        %702 = vmatprep.subr.mxu0 0.0
        %703 = vmatpush1.msra.mxu0 0.0
        %704 = vmatprep.subr.mxu0 0.0
        %705 = vmatpush1.msra.mxu0 0.0
        %706 = vmatprep.subr.mxu0 0.0
        %707 = vmatpush1.msra.mxu0 0.0
        %708 = vmatprep.subr.mxu0 0.0
        %709 = vmatpush1.msra.mxu0 0.0
        %710 = vmatprep.subr.mxu0 0.0
        %711 = vmatpush1.msra.mxu0 0.0
        %712 = vmatprep.subr.mxu0 0.0
        %713 = vmatpush1.msra.mxu0 0.0
        %714 = vmatprep.subr.mxu0 0.0
        %715 = vmatpush1.msra.mxu0 0.0
        %716 = vmatprep.subr.mxu0 0.0
        %717 = vmatpush1.msra.mxu0 0.0
        %718 = vmatprep.mubr.f32.mxu0 0.0
        %719 = vmatmul.mubr.f32.gmra.mrb[0].mxu0 %v652
        %v720 = vpop.f32.mrb[0].mxu0
        %v721 = vadd.f32 %v649, %v720
        %v722 = vpop.f32.mrb[0].mxu0
        %v723 = vadd.f32 %v649, %v722
        %724 = vdwg.mxu0
        %v725 = vsel %vm263, %v721, 0.0
        %v726 = vsel %vm263, %v723, 0.0
        %v727 = vadd.f32 %v725, %v726
        %728 = vadd.xlane.f32.xlu0 %v727
        %v729 = vpop.xlane.xlu0 %728
        %v730 = vmul.f32 %v729, 0.00390625
        %v731 = vsub.f32 %v721, %v730
        %v732 = vsub.f32 %v723, %v730
        %v733 = vmul.f32 %v731, %v731
        %v734 = vmul.f32 %v732, %v732
        %v735 = vsel %vm263, %v733, 0.0
        %v736 = vsel %vm263, %v734, 0.0
        %v737 = vadd.f32 %v735, %v736
        %738 = vadd.xlane.f32.xlu0 %v737
        %v739 = vpop.xlane.xlu0 %738
        %v740 = vmul.f32 %v739, 0.00390625
        %v741 = vadd.f32 %v740, 1e-05
        %v742 = vrsqrt.pop %v741
        %v743 = vmul.f32 %v731, %v742
        %v744 = vmul.f32 %v732, %v742
        %745 = vset.pattern.permute.xlu0 6
        %746 = vperm.xlu0 %745, %v258
        %v747 = vpop.permute.xlu0 %746
        %v749 = vmul.f32 %v743, %v747
        %v750 = vmul.f32 %v744, %v747
        %751 = vset.pattern.permute.xlu0 7
        %752 = vperm.xlu0 %751, %v258
        %v753 = vpop.permute.xlu0 %752
        %v755 = vadd.f32 %v749, %v753
        %v756 = vadd.f32 %v750, %v753
        %v759 = vcombine.low %v755, %v756
        %761 = vst [vmem:[%s243] sm:$0xff] %v759
        %s762 = sand.u32 %s120, 1
        %s763 = scalar_lea.sflag [#allocation6], %s762
        %s764 = sand.u32 %s120, 1
        %s765 = smul.addr %s764, 8
        %s766 = scalar_lea.vmem [#allocation10], %s765
        // Predicated region
        $region49: #{tpu_custom_call.1} parent=35 // pred_check
          %p767 = pneg %p130
        $region50: #{tpu_custom_call.1} parent=35 // pred_check_branch
          %769 = sbr.rel (%p767) target = $region52
        $region51: #{tpu_custom_call.1} parent=35 // pred_region
          %s770 = smul.u32 2, %s23
          %s772 = ssub.s32 128, 128
          %773 = vsyncadd %s763, %s772
          %s774 = smul.addr %s770, 64
          %s775 = scalar_lea.hbm %s4, %s774
          %s777 = sshll.u32 %s766, 4
          %s778 = int_to_ptr.vmem [resolvable:$true] %s777
          %780 = dma.vmem_to_hbm [thread:$0]  %s778, 128, %s775, %s763
        $region52: #{tpu_custom_call.1} parent=35 // pred_fallthru
          _
      $region36: #{tpu_custom_call.1} parent=5 // pred_fallthru
        _
      %p781 = scmp.le.s32.totalorder 2, %s18
      // Predicated region
      $region53: #{tpu_custom_call.1} parent=5 // pred_check
        %p782 = pneg %p781
      $region54: #{tpu_custom_call.1} parent=5 // pred_check_branch
        %784 = sbr.rel (%p782) target = $region56
      $region55: #{tpu_custom_call.1} parent=5 // pred_region
        %s785 = ssub.s32 %s18, 2
        // Predicated region
        $region57: #{tpu_custom_call.1} parent=55 // pred_check
          %p786 = pneg %p136
        $region58: #{tpu_custom_call.1} parent=55 // pred_check_branch
          %788 = sbr.rel (%p786) target = $region60
        $region59: #{tpu_custom_call.1} parent=55 // pred_region
          %s789 = sand.u32 %s121, 1
          %s790 = scalar_lea.sflag [#allocation6], %s789
          %s791 = sand.u32 %s121, 1
          %s792 = smul.addr %s791, 8
          %s793 = scalar_lea.vmem [#allocation10], %s792
          %794 = dma.done %s790, 128
        $region60: #{tpu_custom_call.1} parent=55 // pred_fallthru
          _
      $region56: #{tpu_custom_call.1} parent=5 // pred_fallthru
        _
    $region6: #{tpu_custom_call.1} parent=1 // loop_footer
      %s22 = sadd.s32 1, %s18
    $region7: #{tpu_custom_call.1} parent=1 // loop_footer_branch
      %17 = sbr.rel target = $region3
    $region8: #{tpu_custom_call.1} parent=1 // loop_exit
      _
    %795 = vsyncpa [#allocation5], 1
    %s796 = scalar_lea.sflag [#allocation5], 1
    %797 = vsyncpa %s796, 1
    %798 = vsyncpa [#allocation8], 1
    %799 = vsyncpa [#allocation6], 1
    %s800 = scalar_lea.sflag [#allocation6], 1
    %801 = vsyncpa %s800, 1

</llo_original>
